<compile_context>
chip_gen: v7x
topology: tpu7x:2x2x1
jax: 0.10.0
libtpu: 0.0.40
codegen_flags: <defaults>
</compile_context>

<pallas_src>
import functools

import numpy as np
import jax
import jax.numpy as jnp
from jax.experimental import pallas as pl
from jax.experimental.pallas import tpu as pltpu


def _round_up(x, m):
    return ((x + m - 1) // m) * m


def _cdiv(a, b):
    return (a + b - 1) // b


# --------------------------------------------------------------------------
# Hardware introspection (best effort; safe, conservative fallbacks).
# --------------------------------------------------------------------------
def _device_kind():
    try:
        return jax.devices()[0].device_kind.lower()
    except Exception:
        return ""


def _vmem_capacity_bytes():
    try:
        info = pltpu.get_tpu_info()
        for name in ("vmem_capacity_bytes", "vmem_size_bytes", "vmem_bytes"):
            v = getattr(info, name, None)
            if v:
                return int(v)
    except Exception:
        pass
    kind = _device_kind()
    if "v5" in kind or "v6" in kind:
        return 128 * 1024 * 1024
    return 64 * 1024 * 1024          # v7x / unknown: assume the small VMEM


def _lane_align():
    # v6e/v7x MXU is 2x256x256 -> pad odd feature dims to 256; v5e needs 128.
    return 128 if "v5" in _device_kind() else 256


# --------------------------------------------------------------------------
# Static (trace-time) configuration.
# --------------------------------------------------------------------------
def _ffn_config(M, D, F, x_bytes, out_bytes, tm=None, tf=None, resident=None):
    align = _lane_align()
    vmem_cap = _vmem_capacity_bytes()
    # Leave headroom below physical VMEM for the (tm,tf)/(tm,Fp) f32
    # intermediate h and regalloc spill scratch.
    vmem_limit = (vmem_cap * 13) // 16          # ~104 MiB (128 MiB parts) / ~52 MiB (v7x)
    budget = int(vmem_limit * 0.8)

    Dp = _round_up(D, align)
    Fp = _round_up(F, align)

    big_vmem = vmem_cap >= 96 * 1024 * 1024      # v5e / v6e
    tm_target = tm if tm is not None else (1024 if big_vmem else 512)
    tf_target = tf if tf is not None else (2048 if big_vmem else 1024)

    # Row tile: clamp for small inputs; keep >=2 row tiles on large inputs so
    # the "parallel" row axis can be sharded across both v7x TensorCores.
    tm_v = min(tm_target, _round_up(M, 16))
    if tm is None:
        while M > 512 and _cdiv(M, tm_v) < 2 and tm_v > 256:
            tm_v //= 2

    # ---- weights-fully-resident fast path --------------------------------
    w_bytes = 2 * Dp * Fp * 2                    # w1 + w2 in bf16
    resident_est = (2 * w_bytes                  # worst-case double-buffered
                    + 2 * tm_v * Dp * x_bytes    # x blocks
                    + 2 * tm_v * Dp * out_bytes  # out blocks
                    + tm_v * Fp * 4              # f32 intermediate h
                    + 2 * (Fp + Dp) * 4)         # biases
    if resident is None:
        resident = resident_est <= budget
    if resident:
        Mp = _round_up(M, tm_v)
        return dict(tm=tm_v, tf=Fp, Mp=Mp, Dp=Dp, Fp=Fp, resident=True,
                    vmem_limit=int(vmem_limit))

    # ---- tiled-hidden-dim fallback ----------------------------------------
    def pick_tf(target):
        # Largest multiple of 128 that divides Fp and is <= target
        # (Fp is a multiple of 128, so 128 always works).
        best = 128
        t = 128
        while t <= Fp:
            if Fp % t == 0 and t <= target:
                best = t
            t += 128
        return best

    tf_v = pick_tf(max(tf_target, 128))

    def tiled_est(tm_, tf_):
        return (2 * tm_ * Dp * x_bytes           # x blocks
                + 2 * Dp * tf_ * 2               # w1 tile x2 buffers (bf16)
                + 2 * tf_ * Dp * 2               # w2 tile x2 buffers (bf16)
                + 2 * tm_ * Dp * out_bytes       # out blocks
                + tm_ * Dp * 4                   # f32 accumulator scratch
                + tm_ * tf_ * 4                  # f32 intermediate h
                + 2 * (tf_ + Dp) * 4)            # biases

    if tf is None:
        while tf_v > 128 and tiled_est(tm_v, tf_v) > budget:
            tf_v = pick_tf(tf_v - 128)
    if tm is None:
        while tm_v > 256 and tiled_est(tm_v, tf_v) > budget:
            tm_v //= 2
    Mp = _round_up(M, tm_v)
    return dict(tm=tm_v, tf=tf_v, Mp=Mp, Dp=Dp, Fp=Fp, resident=False,
                vmem_limit=int(vmem_limit))


# --------------------------------------------------------------------------
# Kernels.
# --------------------------------------------------------------------------
def _ffn_resident_kernel(x_ref, w1_ref, b1_ref, w2_ref, b2_ref, o_ref):
    # x_ref: (tm, Dp) in input dtype; w1/w2 bf16 (resident: DMA'd once);
    # b1/b2 f32; o_ref (tm, Dp).
    x = x_ref[...].astype(jnp.bfloat16)
    h = jnp.dot(x, w1_ref[...], preferred_element_type=jnp.float32)
    h = jnp.maximum(h + b1_ref[...], 0.0)
    out = jnp.dot(h.astype(w2_ref.dtype), w2_ref[...],
                  preferred_element_type=jnp.float32)
    o_ref[...] = (out + b2_ref[...]).astype(o_ref.dtype)


def _ffn_tiled_kernel(x_ref, w1_ref, b1_ref, w2_ref, b2_ref, o_ref, acc_ref):
    # Grid = (row tiles, hidden tiles); axis 1 is the reduction over F.
    j = pl.program_id(1)

    @pl.when(j == 0)
    def _():
        acc_ref[...] = jnp.zeros_like(acc_ref)

    x = x_ref[...].astype(jnp.bfloat16)
    h = jnp.dot(x, w1_ref[...], preferred_element_type=jnp.float32)
    h = jnp.maximum(h + b1_ref[...], 0.0)
    # On v7x, verify in the bundle dump that this lowers to MRB in-place
    # accumulation (vmatres) rather than a VMEM f32 load/add/store.
    acc_ref[...] += jnp.dot(h.astype(w2_ref.dtype), w2_ref[...],
                            preferred_element_type=jnp.float32)

    @pl.when(j == pl.num_programs(1) - 1)
    def _():
        o_ref[...] = (acc_ref[...] + b2_ref[...]).astype(o_ref.dtype)


# --------------------------------------------------------------------------
# Jitted forward (all tiling / path decisions are static).
# --------------------------------------------------------------------------
@functools.partial(
    jax.jit,
    static_argnames=("tm", "tf", "Mp", "Dp", "Fp", "resident",
                     "vmem_limit", "out_dtype"))
def _ffn_call(x2d, w1, b1, w2, b2, *, tm, tf, Mp, Dp, Fp, resident,
              vmem_limit, out_dtype):
    M, D = x2d.shape

    # x: pass through (cast to bf16 in-kernel) when already lane-aligned;
    # otherwise pad+cast in a single pass.
    if M == Mp and D == Dp:
        xk = x2d
    else:
        xk = jnp.zeros((Mp, Dp), jnp.bfloat16).at[:M, :D].set(
            x2d.astype(jnp.bfloat16))

    # Weights / biases: pass through when already prepared (see prepare_params),
    # otherwise pad+cast here (one extra pass over the weights).
    if w1.shape == (Dp, Fp) and w1.dtype == jnp.bfloat16:
        w1k = w1
    else:
        w1k = jnp.zeros((Dp, Fp), jnp.bfloat16).at[
            :w1.shape[0], :w1.shape[1]].set(w1.astype(jnp.bfloat16))
    if w2.shape == (Fp, Dp) and w2.dtype == jnp.bfloat16:
        w2k = w2
    else:
        w2k = jnp.zeros((Fp, Dp), jnp.bfloat16).at[
            :w2.shape[0], :w2.shape[1]].set(w2.astype(jnp.bfloat16))

    b1_2d = b1.reshape(1, -1)
    if b1_2d.shape == (1, Fp) and b1_2d.dtype == jnp.float32:
        b1k = b1_2d
    else:
        b1k = jnp.zeros((1, Fp), jnp.float32).at[:, :b1_2d.shape[1]].set(
            b1_2d.astype(jnp.float32))
    b2_2d = b2.reshape(1, -1)
    if b2_2d.shape == (1, Dp) and b2_2d.dtype == jnp.float32:
        b2k = b2_2d
    else:
        b2k = jnp.zeros((1, Dp), jnp.float32).at[:, :b2_2d.shape[1]].set(
            b2_2d.astype(jnp.float32))

    if resident:
        # Weights DMA'd once total (constant block index); no accumulator.
        out2d = pl.pallas_call(
            _ffn_resident_kernel,
            out_shape=jax.ShapeDtypeStruct((Mp, Dp), out_dtype),
            grid_spec=pltpu.PrefetchScalarGridSpec(
                num_scalar_prefetch=0,
                grid=(Mp // tm,),
                in_specs=[
                    pl.BlockSpec((tm, Dp), lambda i: (i, 0)),   # x row tile
                    pl.BlockSpec((Dp, Fp), lambda i: (0, 0)),   # w1 (resident)
                    pl.BlockSpec((1, Fp), lambda i: (0, 0)),    # b1 (resident)
                    pl.BlockSpec((Fp, Dp), lambda i: (0, 0)),   # w2 (resident)
                    pl.BlockSpec((1, Dp), lambda i: (0, 0)),    # b2 (resident)
                ],
                out_specs=pl.BlockSpec((tm, Dp), lambda i: (i, 0)),
            ),
            compiler_params=pltpu.CompilerParams(
                dimension_semantics=("parallel",),
                vmem_limit_bytes=vmem_limit,
            ),
        )(xk, w1k, b1k, w2k, b2k)
    else:
        # NOTE: on v5e, if profiling still shows exposed weight DMA here, add
        # pipeline_mode=pl.Buffered(3) to the w1/w2 BlockSpecs.
        out2d = pl.pallas_call(
            _ffn_tiled_kernel,
            out_shape=jax.ShapeDtypeStruct((Mp, Dp), out_dtype),
            grid_spec=pltpu.PrefetchScalarGridSpec(
                num_scalar_prefetch=0,
                grid=(Mp // tm, Fp // tf),
                in_specs=[
                    pl.BlockSpec((tm, Dp), lambda i, j: (i, 0)),  # x row tile
                    pl.BlockSpec((Dp, tf), lambda i, j: (0, j)),  # w1 col tile
                    pl.BlockSpec((1, tf), lambda i, j: (0, j)),   # b1 tile
                    pl.BlockSpec((tf, Dp), lambda i, j: (j, 0)),  # w2 row tile
                    pl.BlockSpec((1, Dp), lambda i, j: (0, 0)),   # b2 (resident)
                ],
                out_specs=pl.BlockSpec((tm, Dp), lambda i, j: (i, 0)),
                scratch_shapes=[pltpu.VMEM((tm, Dp), jnp.float32)],
            ),
            compiler_params=pltpu.CompilerParams(
                dimension_semantics=("parallel", "arbitrary"),
                vmem_limit_bytes=vmem_limit,
            ),
        )(xk, w1k, b1k, w2k, b2k)

    return out2d[:M, :D]


# --------------------------------------------------------------------------
# Public API.
# --------------------------------------------------------------------------
def prepare_params(w1, b1, w2, b2, *, compute_dtype=jnp.bfloat16):
    """Pad/cast fc1/fc2 parameters once, outside the hot forward path.

    Layout: w1 = (dim, dim_ff), w2 = (dim_ff, dim)  (transpose of PyTorch's
    nn.Linear (out_features, in_features) weight layout).
    """
    D, F = w1.shape
    align = _lane_align()
    Dp, Fp = _round_up(D, align), _round_up(F, align)
    w1p = jnp.zeros((Dp, Fp), compute_dtype).at[:D, :F].set(
        w1.astype(compute_dtype))
    w2p = jnp.zeros((Fp, Dp), compute_dtype).at[:F, :D].set(
        w2.astype(compute_dtype))
    b1p = jnp.zeros((1, Fp), jnp.float32).at[:, :F].set(
        b1.astype(jnp.float32).reshape(1, F))
    b2p = jnp.zeros((1, Dp), jnp.float32).at[:, :D].set(
        b2.astype(jnp.float32).reshape(1, D))
    return w1p, b1p, w2p, b2p


def position_wise_ffn(x, w1, b1, w2, b2, *, out_dtype=None,
                      tm=None, tf=None, resident=None):
    """x: (..., dim); w1: (dim, dim_ff); b1: (dim_ff,); w2: (dim_ff, dim);
    b2: (dim,) — or the prepare_params() padded/cast versions."""
    D = x.shape[-1]
    M = 1
    for s in x.shape[:-1]:
        M *= s
    F = w1.shape[-1]

    align = _lane_align()
    Dp_chk = _round_up(D, align)
    assert w1.shape[0] in (D, Dp_chk) and w2.shape[-1] in (D, Dp_chk), (
        "Expected w1:(dim, dim_ff) and w2:(dim_ff, dim) — transpose PyTorch's "
        "(out_features, in_features) nn.Linear weights before calling.")

    out_dtype = x.dtype if out_dtype is None else out_dtype
    cfg = _ffn_config(M, D, F,
                      x_bytes=x.dtype.itemsize,
                      out_bytes=np.dtype(out_dtype).itemsize,
                      tm=tm, tf=tf, resident=resident)
    out2d = _ffn_call(x.reshape(M, D), w1, b1, w2, b2,
                      out_dtype=out_dtype, **cfg)
    return out2d.reshape(*x.shape[:-1], D)


def init_params(key, dim, dim_ff, dtype=jnp.float32):
    """Deterministic init mimicking nn.Linear (uniform +/- 1/sqrt(fan_in)).
    Weights are stored as (in, out) so the kernel computes x @ w directly."""
    k1, k2, k3, k4 = jax.random.split(key, 4)
    lim1 = 1.0 / (dim ** 0.5)
    lim2 = 1.0 / (dim_ff ** 0.5)
    w1 = jax.random.uniform(k1, (dim, dim_ff), dtype, -lim1, lim1)
    b1 = jax.random.uniform(k2, (dim_ff,), dtype, -lim1, lim1)
    w2 = jax.random.uniform(k3, (dim_ff, dim), dtype, -lim2, lim2)
    b2 = jax.random.uniform(k4, (dim,), dtype, -lim2, lim2)
    return w1, b1, w2, b2


if __name__ == "__main__":
    # Small config: batch=2, seq=8, dim=32, dim_ff=64
    B, S, DIM, DIM_FF = 2, 8, 32, 64

    key = jax.random.PRNGKey(0)
    kx, kp = jax.random.split(key)
    x = jax.random.normal(kx, (B, S, DIM), dtype=jnp.float32)
    w1, b1, w2, b2 = init_params(kp, DIM, DIM_FF)

    # Hot path: parameters padded/cast once, outside the jitted forward.
    w1p, b1p, w2p, b2p = prepare_params(w1, b1, w2, b2)
    out = jax.block_until_ready(position_wise_ffn(x, w1p, b1p, w2p, b2p))
    assert out.shape == (B, S, DIM)

    # Raw-parameter path (padding/casting inside the call) must agree.
    out_raw = jax.block_until_ready(position_wise_ffn(x, w1, b1, w2, b2))
    assert jnp.allclose(out, out_raw, atol=1e-5, rtol=1e-5), (
        float(jnp.max(jnp.abs(out - out_raw))))

    # Tiled-hidden-dim fallback path (forced) must also agree.
    out_tiled = jax.block_until_ready(
        position_wise_ffn(x, w1p, b1p, w2p, b2p, resident=False, tf=128))
    assert jnp.allclose(out, out_tiled, atol=1e-4, rtol=1e-4), (
        float(jnp.max(jnp.abs(out - out_tiled))))

    # Reference mirroring the kernel numerics (bf16 matmul operands,
    # f32 accumulation, f32 bias/ReLU epilogue).
    f32 = jnp.float32
    xb = x.astype(jnp.bfloat16).astype(f32)
    w1b = w1.astype(jnp.bfloat16).astype(f32)
    w2b = w2.astype(jnp.bfloat16).astype(f32)
    h = jnp.maximum(xb @ w1b + b1, 0.0)
    ref = h.astype(jnp.bfloat16).astype(f32) @ w2b + b2
    assert jnp.allclose(out, ref, atol=1e-3, rtol=1e-3), (
        float(jnp.max(jnp.abs(out - ref))))

    # Loose sanity check against the pure-f32 reference (bf16 matmuls change
    # numerics at the ~1e-2 level, as expected).
    ref_f32 = jnp.maximum(x @ w1 + b1, 0.0) @ w2 + b2
    assert jnp.allclose(out, ref_f32, atol=5e-2, rtol=5e-2)

    print("KERNEL_OK")
</pallas_src>

<mosaic_0001>
module attributes {stable_mosaic.version = 11 : i64} {
  func.func @_ffn_resident_kernel(%arg0: i32, %arg1: memref<16x256xbf16, #tpu.memory_space<vmem>>, %arg2: memref<256x256xbf16, #tpu.memory_space<vmem>>, %arg3: memref<1x256xf32, #tpu.memory_space<vmem>>, %arg4: memref<256x256xbf16, #tpu.memory_space<vmem>>, %arg5: memref<1x256xf32, #tpu.memory_space<vmem>>, %arg6: memref<16x256xf32, #tpu.memory_space<vmem>>) attributes {dimension_semantics = [#tpu.dimension_semantics<parallel>], iteration_bounds = array<i64: 1>, scalar_prefetch = 0 : i64, scratch_operands = 0 : i64, tpu.core_type = #tpu.core_type<tc>, window_params = [{transform_indices = @transform_0, window_bounds = array<i64: 16, 256>}, {pipeline_mode = #tpu.pipeline_mode<synchronous>, transform_indices = @transform_1, window_bounds = array<i64: 256, 256>}, {pipeline_mode = #tpu.pipeline_mode<synchronous>, transform_indices = @transform_2, window_bounds = array<i64: 1, 256>}, {pipeline_mode = #tpu.pipeline_mode<synchronous>, transform_indices = @transform_3, window_bounds = array<i64: 256, 256>}, {pipeline_mode = #tpu.pipeline_mode<synchronous>, transform_indices = @transform_4, window_bounds = array<i64: 1, 256>}, {transform_indices = @transform_5, window_bounds = array<i64: 16, 256>}]} {
    %c0 = arith.constant 0 : index
    %c0_0 = arith.constant 0 : index
    %0 = vector.load %arg1[%c0, %c0_0] : memref<16x256xbf16, #tpu.memory_space<vmem>>, vector<16x256xbf16>
    %c0_1 = arith.constant 0 : index
    %c0_2 = arith.constant 0 : index
    %1 = vector.load %arg2[%c0_1, %c0_2] : memref<256x256xbf16, #tpu.memory_space<vmem>>, vector<256x256xbf16>
    %cst = arith.constant dense<0.000000e+00> : vector<16x256xf32>
    %2 = tpu.matmul %0, %1, %cst {dimension_numbers = #tpu.dot_dimension_numbers<[1], [0], [0], [1], [0, 0, 1, 1], [], []>} : vector<16x256xbf16>, vector<256x256xbf16>, vector<16x256xf32> -> vector<16x256xf32>
    %c0_3 = arith.constant 0 : index
    %c0_4 = arith.constant 0 : index
    %3 = vector.load %arg3[%c0_3, %c0_4] : memref<1x256xf32, #tpu.memory_space<vmem>>, vector<1x256xf32>
    %4 = vector.broadcast %3 : vector<1x256xf32> to vector<16x256xf32>
    %5 = arith.addf %2, %4 : vector<16x256xf32>
    %cst_5 = arith.constant 0.000000e+00 : f32
    %6 = vector.broadcast %cst_5 : f32 to vector<16x256xf32>
    %7 = arith.maximumf %5, %6 : vector<16x256xf32>
    %8 = arith.truncf %7 : vector<16x256xf32> to vector<16x256xbf16>
    %c0_6 = arith.constant 0 : index
    %c0_7 = arith.constant 0 : index
    %9 = vector.load %arg4[%c0_6, %c0_7] : memref<256x256xbf16, #tpu.memory_space<vmem>>, vector<256x256xbf16>
    %cst_8 = arith.constant dense<0.000000e+00> : vector<16x256xf32>
    %10 = tpu.matmul %8, %9, %cst_8 {dimension_numbers = #tpu.dot_dimension_numbers<[1], [0], [0], [1], [0, 0, 1, 1], [], []>} : vector<16x256xbf16>, vector<256x256xbf16>, vector<16x256xf32> -> vector<16x256xf32>
    %c0_9 = arith.constant 0 : index
    %c0_10 = arith.constant 0 : index
    %11 = vector.load %arg5[%c0_9, %c0_10] : memref<1x256xf32, #tpu.memory_space<vmem>>, vector<1x256xf32>
    %12 = vector.broadcast %11 : vector<1x256xf32> to vector<16x256xf32>
    %13 = arith.addf %10, %12 : vector<16x256xf32>
    %c0_11 = arith.constant 0 : index
    %c0_12 = arith.constant 0 : index
    %14 = vector.load %arg6[%c0_11, %c0_12] : memref<16x256xf32, #tpu.memory_space<vmem>>, vector<16x256xf32>
    tpu.vector_store %arg6[%c0_11, %c0_12], %13 {strides = array<i32>} : memref<16x256xf32, #tpu.memory_space<vmem>>, vector<16x256xf32>,
    return
  }
  func.func @transform_0(%arg0: i32) -> (i32, i32) {
    %c0_i32 = arith.constant 0 : i32
    %c0_i32_0 = arith.constant 0 : i32
    return %arg0, %c0_i32 : i32, i32
  }
  func.func @transform_1(%arg0: i32) -> (i32, i32) {
    %c0_i32 = arith.constant 0 : i32
    %c0_i32_0 = arith.constant 0 : i32
    %c0_i32_1 = arith.constant 0 : i32
    return %c0_i32, %c0_i32_0 : i32, i32
  }
  func.func @transform_2(%arg0: i32) -> (i32, i32) {
    %c0_i32 = arith.constant 0 : i32
    %c0_i32_0 = arith.constant 0 : i32
    %c0_i32_1 = arith.constant 0 : i32
    return %c0_i32, %c0_i32_0 : i32, i32
  }
  func.func @transform_3(%arg0: i32) -> (i32, i32) {
    %c0_i32 = arith.constant 0 : i32
    %c0_i32_0 = arith.constant 0 : i32
    %c0_i32_1 = arith.constant 0 : i32
    return %c0_i32, %c0_i32_0 : i32, i32
  }
  func.func @transform_4(%arg0: i32) -> (i32, i32) {
    %c0_i32 = arith.constant 0 : i32
    %c0_i32_0 = arith.constant 0 : i32
    %c0_i32_1 = arith.constant 0 : i32
    return %c0_i32, %c0_i32_0 : i32, i32
  }
  func.func @transform_5(%arg0: i32) -> (i32, i32) {
    %c0_i32 = arith.constant 0 : i32
    %c0_i32_0 = arith.constant 0 : i32
    return %arg0, %c0_i32 : i32, i32
  }
}

</mosaic_0001>

<llo_original>
// kernel: _ffn_call.1
$region0: #{_ffn_call.1}
  #allocation0 [shape = 'u32[]', space=smem, size = 0x4, offset = 0x4, fixed_abs, tag = 'smem constant byte address 0x4 - core index']
  #allocation1 [shape = 'u32[144,128]{1,0:T(1,128)}', space=vmem, size = 0x12000, scoped, tag = 'internal scratch']
  %s0 = inlined_call_operand.vmem [shape: bf16[16,256], index: 0, kind: input, shape index: {}]
  %s1 = inlined_call_operand.hbm [shape: bf16[256,256], index: 1, kind: input, shape index: {}]
  %s2 = inlined_call_operand.vmem [shape: f32[1,256], index: 2, kind: input, shape index: {}]
  %s3 = inlined_call_operand.hbm [shape: bf16[256,256], index: 3, kind: input, shape index: {}]
  %s4 = inlined_call_operand.vmem [shape: f32[1,256], index: 4, kind: input, shape index: {}]
  %s5 = inlined_call_operand.vmem [shape: f32[16,256], index: 5, kind: output, shape index: {}]
  %s6 = sld [smem:[#allocation0]]
  $region38: #{_ffn_call.1} parent=0
    _
  %s8 = ssub.s32 1, %s6
  %s9 = scalar_select 0, %s8, %s6
  $region1: #{_ffn_call.1} parent=0
    #allocation2 [shape = 'u8[131072]{0}', space=vmem, size = 0x20000, scoped, tag = 'input window, operand 1, single buffered']
    #allocation3 [shape = 's32[1]{0}', space=sflag, size = 0x4, scoped, tag = 'scoped memory for _ffn_call.1']
    #allocation4 [shape = 'u8[131072]{0}', space=vmem, size = 0x20000, scoped, tag = 'input window, operand 3, single buffered']
    #allocation5 [shape = 's32[1]{0}', space=sflag, size = 0x4, scoped, tag = 'scoped memory for _ffn_call.1']
    %10 = vsyncpa [#allocation3], 0
    %11 = vsyncpa [#allocation5], 0
    // Predicated region
    $region2: #{_ffn_call.1} parent=1 // pred_check
      _
    $region3: #{_ffn_call.1} parent=1 // pred_check_branch
      %13 = sbr.rel (0) target = $region5
    $region4: #{_ffn_call.1} parent=1 // pred_region
      _
    $region5: #{_ffn_call.1} parent=1 // pred_fallthru
      _
    // Predicated region
    $region6: #{_ffn_call.1} parent=1 // pred_check
      _
    $region7: #{_ffn_call.1} parent=1 // pred_check_branch
      %15 = sbr.rel (0) target = $region9
    $region8: #{_ffn_call.1} parent=1 // pred_region
      %s17 = ssub.s32 4096, 4096
      %18 = vsyncadd [#allocation3], %s17
      %s19 = sshll.u32 [#allocation2], 4
      %s20 = int_to_ptr.vmem [resolvable:$true] %s19
      %25 = dma.hbm_to_vmem [thread:$0]  %s1, 4096, %s20, [#allocation3], 128, 128, 8
    $region9: #{_ffn_call.1} parent=1 // pred_fallthru
      _
    // Predicated region
    $region10: #{_ffn_call.1} parent=1 // pred_check
      _
    $region11: #{_ffn_call.1} parent=1 // pred_check_branch
      %27 = sbr.rel (0) target = $region13
    $region12: #{_ffn_call.1} parent=1 // pred_region
      _
    $region13: #{_ffn_call.1} parent=1 // pred_fallthru
      _
    // Predicated region
    $region14: #{_ffn_call.1} parent=1 // pred_check
      _
    $region15: #{_ffn_call.1} parent=1 // pred_check_branch
      %29 = sbr.rel (0) target = $region17
    $region16: #{_ffn_call.1} parent=1 // pred_region
      %s31 = ssub.s32 4096, 4096
      %32 = vsyncadd [#allocation5], %s31
      %s33 = sshll.u32 [#allocation4], 4
      %s34 = int_to_ptr.vmem [resolvable:$true] %s33
      %39 = dma.hbm_to_vmem [thread:$0]  %s3, 4096, %s34, [#allocation5], 128, 128, 8
    $region17: #{_ffn_call.1} parent=1 // pred_fallthru
      _
    // Predicated region
    $region18: #{_ffn_call.1} parent=1 // pred_check
      _
    $region19: #{_ffn_call.1} parent=1 // pred_check_branch
      %41 = sbr.rel (0) target = $region21
    $region20: #{_ffn_call.1} parent=1 // pred_region
      _
    $region21: #{_ffn_call.1} parent=1 // pred_fallthru
      _
    // Predicated region
    $region22: #{_ffn_call.1} parent=1 // pred_check
      _
    $region23: #{_ffn_call.1} parent=1 // pred_check_branch
      %43 = sbr.rel (0) target = $region25
    $region24: #{_ffn_call.1} parent=1 // pred_region
      %44 = dma.done [#allocation3], 4096
    $region25: #{_ffn_call.1} parent=1 // pred_fallthru
      _
    // Predicated region
    $region26: #{_ffn_call.1} parent=1 // pred_check
      _
    $region27: #{_ffn_call.1} parent=1 // pred_check_branch
      %46 = sbr.rel (0) target = $region29
    $region28: #{_ffn_call.1} parent=1 // pred_region
      %47 = dma.done [#allocation5], 4096
    $region29: #{_ffn_call.1} parent=1 // pred_fallthru
      _
    %v48 = vld [vmem:[%s0] sm:$0xff]
    %v49 = vld [vmem:[%s0 + $0x8] sm:$0xff]
    %v50 = vld [vmem:[#allocation2] sm:$0xff]
    %v51 = vld [vmem:[#allocation2 + $0x8] sm:$0xff]
    %v52 = vld [vmem:[#allocation2 + $0x10] sm:$0xff]
    %v53 = vld [vmem:[#allocation2 + $0x18] sm:$0xff]
    %v54 = vld [vmem:[#allocation2 + $0x20] sm:$0xff]
    %v55 = vld [vmem:[#allocation2 + $0x28] sm:$0xff]
    %v56 = vld [vmem:[#allocation2 + $0x30] sm:$0xff]
    %v57 = vld [vmem:[#allocation2 + $0x38] sm:$0xff]
    %v58 = vld [vmem:[#allocation2 + $0x40] sm:$0xff]
    %v59 = vld [vmem:[#allocation2 + $0x48] sm:$0xff]
    %v60 = vld [vmem:[#allocation2 + $0x50] sm:$0xff]
    %v61 = vld [vmem:[#allocation2 + $0x58] sm:$0xff]
    %v62 = vld [vmem:[#allocation2 + $0x60] sm:$0xff]
    %v63 = vld [vmem:[#allocation2 + $0x68] sm:$0xff]
    %v64 = vld [vmem:[#allocation2 + $0x70] sm:$0xff]
    %v65 = vld [vmem:[#allocation2 + $0x78] sm:$0xff]
    %v66 = vld [vmem:[#allocation2 + $0x80] sm:$0xff]
    %v67 = vld [vmem:[#allocation2 + $0x88] sm:$0xff]
    %v68 = vld [vmem:[#allocation2 + $0x90] sm:$0xff]
    %v69 = vld [vmem:[#allocation2 + $0x98] sm:$0xff]
    %v70 = vld [vmem:[#allocation2 + $0xa0] sm:$0xff]
    %v71 = vld [vmem:[#allocation2 + $0xa8] sm:$0xff]
    %v72 = vld [vmem:[#allocation2 + $0xb0] sm:$0xff]
    %v73 = vld [vmem:[#allocation2 + $0xb8] sm:$0xff]
    %v74 = vld [vmem:[#allocation2 + $0xc0] sm:$0xff]
    %v75 = vld [vmem:[#allocation2 + $0xc8] sm:$0xff]
    %v76 = vld [vmem:[#allocation2 + $0xd0] sm:$0xff]
    %v77 = vld [vmem:[#allocation2 + $0xd8] sm:$0xff]
    %v78 = vld [vmem:[#allocation2 + $0xe0] sm:$0xff]
    %v79 = vld [vmem:[#allocation2 + $0xe8] sm:$0xff]
    %v80 = vld [vmem:[#allocation2 + $0xf0] sm:$0xff]
    %v81 = vld [vmem:[#allocation2 + $0xf8] sm:$0xff]
    %v82 = vld [vmem:[%s2] sm:$0x3]
    %v84 = vlaneseq
    %v85 = vshrl.u32 %v84, 7
    %v86 = vsub.s32 0, %v85
    %v87 = vrot.slane %v82, %v86
    %v88 = vlaneseq
    %v89 = vshrl.u32 %v88, 7
    %v90 = vsub.s32 1, %v89
    %v91 = vrot.slane %v82, %v90
    %v96 = vunpack.c.l.b16 %v48
    %v97 = vunpack.c.h.b16 %v48
    %v98 = vunpack.c.l.b16 %v49
    %v99 = vunpack.c.h.b16 %v49
    %v100 = vpack.c.b16 %v98, %v96
    %v101 = vpack.c.b16 %v99, %v97
    %v136 = vunpack.c.l.b16 %v50
    %v137 = vunpack.c.h.b16 %v50
    %v138 = vunpack.c.l.b16 %v51
    %v139 = vunpack.c.h.b16 %v51
    %v140 = vunpack.c.l.b16 %v52
    %v141 = vunpack.c.h.b16 %v52
    %v142 = vunpack.c.l.b16 %v53
    %v143 = vunpack.c.h.b16 %v53
    %v144 = vunpack.c.l.b16 %v54
    %v145 = vunpack.c.h.b16 %v54
    %v146 = vunpack.c.l.b16 %v55
    %v147 = vunpack.c.h.b16 %v55
    %v148 = vunpack.c.l.b16 %v56
    %v149 = vunpack.c.h.b16 %v56
    %v150 = vunpack.c.l.b16 %v57
    %v151 = vunpack.c.h.b16 %v57
    %v152 = vunpack.c.l.b16 %v58
    %v153 = vunpack.c.h.b16 %v58
    %v154 = vunpack.c.l.b16 %v59
    %v155 = vunpack.c.h.b16 %v59
    %v156 = vunpack.c.l.b16 %v60
    %v157 = vunpack.c.h.b16 %v60
    %v158 = vunpack.c.l.b16 %v61
    %v159 = vunpack.c.h.b16 %v61
    %v160 = vunpack.c.l.b16 %v62
    %v161 = vunpack.c.h.b16 %v62
    %v162 = vunpack.c.l.b16 %v63
    %v163 = vunpack.c.h.b16 %v63
    %v164 = vunpack.c.l.b16 %v64
    %v165 = vunpack.c.h.b16 %v64
    %v166 = vunpack.c.l.b16 %v65
    %v167 = vunpack.c.h.b16 %v65
    %v168 = vunpack.c.l.b16 %v66
    %v169 = vunpack.c.h.b16 %v66
    %v170 = vunpack.c.l.b16 %v67
    %v171 = vunpack.c.h.b16 %v67
    %v172 = vunpack.c.l.b16 %v68
    %v173 = vunpack.c.h.b16 %v68
    %v174 = vunpack.c.l.b16 %v69
    %v175 = vunpack.c.h.b16 %v69
    %v176 = vunpack.c.l.b16 %v70
    %v177 = vunpack.c.h.b16 %v70
    %v178 = vunpack.c.l.b16 %v71
    %v179 = vunpack.c.h.b16 %v71
    %v180 = vunpack.c.l.b16 %v72
    %v181 = vunpack.c.h.b16 %v72
    %v182 = vunpack.c.l.b16 %v73
    %v183 = vunpack.c.h.b16 %v73
    %v184 = vunpack.c.l.b16 %v74
    %v185 = vunpack.c.h.b16 %v74
    %v186 = vunpack.c.l.b16 %v75
    %v187 = vunpack.c.h.b16 %v75
    %v188 = vunpack.c.l.b16 %v76
    %v189 = vunpack.c.h.b16 %v76
    %v190 = vunpack.c.l.b16 %v77
    %v191 = vunpack.c.h.b16 %v77
    %v192 = vunpack.c.l.b16 %v78
    %v193 = vunpack.c.h.b16 %v78
    %v194 = vunpack.c.l.b16 %v79
    %v195 = vunpack.c.h.b16 %v79
    %v196 = vunpack.c.l.b16 %v80
    %v197 = vunpack.c.h.b16 %v80
    %v198 = vunpack.c.l.b16 %v81
    %v199 = vunpack.c.h.b16 %v81
    %v200 = vpack.c.b16 %v138, %v136
    %v201 = vpack.c.b16 %v139, %v137
    %v202 = vpack.c.b16 %v142, %v140
    %v203 = vpack.c.b16 %v143, %v141
    %v204 = vpack.c.b16 %v146, %v144
    %v205 = vpack.c.b16 %v147, %v145
    %v206 = vpack.c.b16 %v150, %v148
    %v207 = vpack.c.b16 %v151, %v149
    %v208 = vpack.c.b16 %v154, %v152
    %v209 = vpack.c.b16 %v155, %v153
    %v210 = vpack.c.b16 %v158, %v156
    %v211 = vpack.c.b16 %v159, %v157
    %v212 = vpack.c.b16 %v162, %v160
    %v213 = vpack.c.b16 %v163, %v161
    %v214 = vpack.c.b16 %v166, %v164
    %v215 = vpack.c.b16 %v167, %v165
    %v216 = vpack.c.b16 %v170, %v168
    %v217 = vpack.c.b16 %v171, %v169
    %v218 = vpack.c.b16 %v174, %v172
    %v219 = vpack.c.b16 %v175, %v173
    %v220 = vpack.c.b16 %v178, %v176
    %v221 = vpack.c.b16 %v179, %v177
    %v222 = vpack.c.b16 %v182, %v180
    %v223 = vpack.c.b16 %v183, %v181
    %v224 = vpack.c.b16 %v186, %v184
    %v225 = vpack.c.b16 %v187, %v185
    %v226 = vpack.c.b16 %v190, %v188
    %v227 = vpack.c.b16 %v191, %v189
    %v228 = vpack.c.b16 %v194, %v192
    %v229 = vpack.c.b16 %v195, %v193
    %v230 = vpack.c.b16 %v198, %v196
    %v231 = vpack.c.b16 %v199, %v197
    %264 = vmatprep.subr.bf16.mxu0 %v201
    %265 = vmatpush1.bf16.msra.mxu0 %v200
    %266 = vmatprep.subr.bf16.mxu0 %v203
    %267 = vmatpush1.bf16.msra.mxu0 %v202
    %268 = vmatprep.subr.bf16.mxu0 %v205
    %269 = vmatpush1.bf16.msra.mxu0 %v204
    %270 = vmatprep.subr.bf16.mxu0 %v207
    %271 = vmatpush1.bf16.msra.mxu0 %v206
    %272 = vmatprep.subr.bf16.mxu0 %v209
    %273 = vmatpush1.bf16.msra.mxu0 %v208
    %274 = vmatprep.subr.bf16.mxu0 %v211
    %275 = vmatpush1.bf16.msra.mxu0 %v210
    %276 = vmatprep.subr.bf16.mxu0 %v213
    %277 = vmatpush1.bf16.msra.mxu0 %v212
    %278 = vmatprep.subr.bf16.mxu0 %v215
    %279 = vmatpush1.bf16.msra.mxu0 %v214
    %280 = vmatprep.subr.bf16.mxu0 %v217
    %281 = vmatpush1.bf16.msra.mxu0 %v216
    %282 = vmatprep.subr.bf16.mxu0 %v219
    %283 = vmatpush1.bf16.msra.mxu0 %v218
    %284 = vmatprep.subr.bf16.mxu0 %v221
    %285 = vmatpush1.bf16.msra.mxu0 %v220
    %286 = vmatprep.subr.bf16.mxu0 %v223
    %287 = vmatpush1.bf16.msra.mxu0 %v222
    %288 = vmatprep.subr.bf16.mxu0 %v225
    %289 = vmatpush1.bf16.msra.mxu0 %v224
    %290 = vmatprep.subr.bf16.mxu0 %v227
    %291 = vmatpush1.bf16.msra.mxu0 %v226
    %292 = vmatprep.subr.bf16.mxu0 %v229
    %293 = vmatpush1.bf16.msra.mxu0 %v228
    %294 = vmatprep.subr.bf16.mxu0 %v231
    %295 = vmatpush1.bf16.msra.mxu0 %v230
    %296 = vmatprep.mubr.bf16.mxu0 %v101
    %297 = vmatmul.mubr.bf16.gmra.mrb[0].mxu0 %v100
    %v298 = vpop.f32.mrb[0].mxu0
    %v299 = vadd.f32 %v87, %v298
    %v300 = vpop.f32.mrb[0].mxu0
    %v301 = vadd.f32 %v91, %v300
    %v302 = vpop.f32.mrb[0].mxu0
    %v303 = vadd.f32 %v87, %v302
    %v304 = vpop.f32.mrb[0].mxu0
    %v305 = vadd.f32 %v91, %v304
    %306 = vdwg.mxu0
    %v307 = vmax.f32 %v299, 0.0
    %v308 = vmax.f32 %v301, 0.0
    %v309 = vmax.f32 %v303, 0.0
    %v310 = vmax.f32 %v305, 0.0
    %v311 = vpack.c.bf16 %v309, %v307
    %v312 = vpack.c.bf16 %v310, %v308
    %v313 = vld [vmem:[#allocation4] sm:$0xff]
    %v314 = vld [vmem:[#allocation4 + $0x8] sm:$0xff]
    %v315 = vld [vmem:[#allocation4 + $0x10] sm:$0xff]
    %v316 = vld [vmem:[#allocation4 + $0x18] sm:$0xff]
    %v317 = vld [vmem:[#allocation4 + $0x20] sm:$0xff]
    %v318 = vld [vmem:[#allocation4 + $0x28] sm:$0xff]
    %v319 = vld [vmem:[#allocation4 + $0x30] sm:$0xff]
    %v320 = vld [vmem:[#allocation4 + $0x38] sm:$0xff]
    %v321 = vld [vmem:[#allocation4 + $0x40] sm:$0xff]
    %v322 = vld [vmem:[#allocation4 + $0x48] sm:$0xff]
    %v323 = vld [vmem:[#allocation4 + $0x50] sm:$0xff]
    %v324 = vld [vmem:[#allocation4 + $0x58] sm:$0xff]
    %v325 = vld [vmem:[#allocation4 + $0x60] sm:$0xff]
    %v326 = vld [vmem:[#allocation4 + $0x68] sm:$0xff]
    %v327 = vld [vmem:[#allocation4 + $0x70] sm:$0xff]
    %v328 = vld [vmem:[#allocation4 + $0x78] sm:$0xff]
    %v329 = vld [vmem:[#allocation4 + $0x80] sm:$0xff]
    %v330 = vld [vmem:[#allocation4 + $0x88] sm:$0xff]
    %v331 = vld [vmem:[#allocation4 + $0x90] sm:$0xff]
    %v332 = vld [vmem:[#allocation4 + $0x98] sm:$0xff]
    %v333 = vld [vmem:[#allocation4 + $0xa0] sm:$0xff]
    %v334 = vld [vmem:[#allocation4 + $0xa8] sm:$0xff]
    %v335 = vld [vmem:[#allocation4 + $0xb0] sm:$0xff]
    %v336 = vld [vmem:[#allocation4 + $0xb8] sm:$0xff]
    %v337 = vld [vmem:[#allocation4 + $0xc0] sm:$0xff]
    %v338 = vld [vmem:[#allocation4 + $0xc8] sm:$0xff]
    %v339 = vld [vmem:[#allocation4 + $0xd0] sm:$0xff]
    %v340 = vld [vmem:[#allocation4 + $0xd8] sm:$0xff]
    %v341 = vld [vmem:[#allocation4 + $0xe0] sm:$0xff]
    %v342 = vld [vmem:[#allocation4 + $0xe8] sm:$0xff]
    %v343 = vld [vmem:[#allocation4 + $0xf0] sm:$0xff]
    %v344 = vld [vmem:[#allocation4 + $0xf8] sm:$0xff]
    %v345 = vld [vmem:[%s4] sm:$0x3]
    %v347 = vlaneseq
    %v348 = vshrl.u32 %v347, 7
    %v349 = vsub.s32 0, %v348
    %v350 = vrot.slane %v345, %v349
    %v351 = vlaneseq
    %v352 = vshrl.u32 %v351, 7
    %v353 = vsub.s32 1, %v352
    %v354 = vrot.slane %v345, %v353
    %v389 = vunpack.c.l.b16 %v313
    %v390 = vunpack.c.h.b16 %v313
    %v391 = vunpack.c.l.b16 %v314
    %v392 = vunpack.c.h.b16 %v314
    %v393 = vunpack.c.l.b16 %v315
    %v394 = vunpack.c.h.b16 %v315
    %v395 = vunpack.c.l.b16 %v316
    %v396 = vunpack.c.h.b16 %v316
    %v397 = vunpack.c.l.b16 %v317
    %v398 = vunpack.c.h.b16 %v317
    %v399 = vunpack.c.l.b16 %v318
    %v400 = vunpack.c.h.b16 %v318
    %v401 = vunpack.c.l.b16 %v319
    %v402 = vunpack.c.h.b16 %v319
    %v403 = vunpack.c.l.b16 %v320
    %v404 = vunpack.c.h.b16 %v320
    %v405 = vunpack.c.l.b16 %v321
    %v406 = vunpack.c.h.b16 %v321
    %v407 = vunpack.c.l.b16 %v322
    %v408 = vunpack.c.h.b16 %v322
    %v409 = vunpack.c.l.b16 %v323
    %v410 = vunpack.c.h.b16 %v323
    %v411 = vunpack.c.l.b16 %v324
    %v412 = vunpack.c.h.b16 %v324
    %v413 = vunpack.c.l.b16 %v325
    %v414 = vunpack.c.h.b16 %v325
    %v415 = vunpack.c.l.b16 %v326
    %v416 = vunpack.c.h.b16 %v326
    %v417 = vunpack.c.l.b16 %v327
    %v418 = vunpack.c.h.b16 %v327
    %v419 = vunpack.c.l.b16 %v328
    %v420 = vunpack.c.h.b16 %v328
    %v421 = vunpack.c.l.b16 %v329
    %v422 = vunpack.c.h.b16 %v329
    %v423 = vunpack.c.l.b16 %v330
    %v424 = vunpack.c.h.b16 %v330
    %v425 = vunpack.c.l.b16 %v331
    %v426 = vunpack.c.h.b16 %v331
    %v427 = vunpack.c.l.b16 %v332
    %v428 = vunpack.c.h.b16 %v332
    %v429 = vunpack.c.l.b16 %v333
    %v430 = vunpack.c.h.b16 %v333
    %v431 = vunpack.c.l.b16 %v334
    %v432 = vunpack.c.h.b16 %v334
    %v433 = vunpack.c.l.b16 %v335
    %v434 = vunpack.c.h.b16 %v335
    %v435 = vunpack.c.l.b16 %v336
    %v436 = vunpack.c.h.b16 %v336
    %v437 = vunpack.c.l.b16 %v337
    %v438 = vunpack.c.h.b16 %v337
    %v439 = vunpack.c.l.b16 %v338
    %v440 = vunpack.c.h.b16 %v338
    %v441 = vunpack.c.l.b16 %v339
    %v442 = vunpack.c.h.b16 %v339
    %v443 = vunpack.c.l.b16 %v340
    %v444 = vunpack.c.h.b16 %v340
    %v445 = vunpack.c.l.b16 %v341
    %v446 = vunpack.c.h.b16 %v341
    %v447 = vunpack.c.l.b16 %v342
    %v448 = vunpack.c.h.b16 %v342
    %v449 = vunpack.c.l.b16 %v343
    %v450 = vunpack.c.h.b16 %v343
    %v451 = vunpack.c.l.b16 %v344
    %v452 = vunpack.c.h.b16 %v344
    %v453 = vpack.c.b16 %v391, %v389
    %v454 = vpack.c.b16 %v392, %v390
    %v455 = vpack.c.b16 %v395, %v393
    %v456 = vpack.c.b16 %v396, %v394
    %v457 = vpack.c.b16 %v399, %v397
    %v458 = vpack.c.b16 %v400, %v398
    %v459 = vpack.c.b16 %v403, %v401
    %v460 = vpack.c.b16 %v404, %v402
    %v461 = vpack.c.b16 %v407, %v405
    %v462 = vpack.c.b16 %v408, %v406
    %v463 = vpack.c.b16 %v411, %v409
    %v464 = vpack.c.b16 %v412, %v410
    %v465 = vpack.c.b16 %v415, %v413
    %v466 = vpack.c.b16 %v416, %v414
    %v467 = vpack.c.b16 %v419, %v417
    %v468 = vpack.c.b16 %v420, %v418
    %v469 = vpack.c.b16 %v423, %v421
    %v470 = vpack.c.b16 %v424, %v422
    %v471 = vpack.c.b16 %v427, %v425
    %v472 = vpack.c.b16 %v428, %v426
    %v473 = vpack.c.b16 %v431, %v429
    %v474 = vpack.c.b16 %v432, %v430
    %v475 = vpack.c.b16 %v435, %v433
    %v476 = vpack.c.b16 %v436, %v434
    %v477 = vpack.c.b16 %v439, %v437
    %v478 = vpack.c.b16 %v440, %v438
    %v479 = vpack.c.b16 %v443, %v441
    %v480 = vpack.c.b16 %v444, %v442
    %v481 = vpack.c.b16 %v447, %v445
    %v482 = vpack.c.b16 %v448, %v446
    %v483 = vpack.c.b16 %v451, %v449
    %v484 = vpack.c.b16 %v452, %v450
    %517 = vmatprep.subr.bf16.mxu0 %v454
    %518 = vmatpush1.bf16.msra.mxu0 %v453
    %519 = vmatprep.subr.bf16.mxu0 %v456
    %520 = vmatpush1.bf16.msra.mxu0 %v455
    %521 = vmatprep.subr.bf16.mxu0 %v458
    %522 = vmatpush1.bf16.msra.mxu0 %v457
    %523 = vmatprep.subr.bf16.mxu0 %v460
    %524 = vmatpush1.bf16.msra.mxu0 %v459
    %525 = vmatprep.subr.bf16.mxu0 %v462
    %526 = vmatpush1.bf16.msra.mxu0 %v461
    %527 = vmatprep.subr.bf16.mxu0 %v464
    %528 = vmatpush1.bf16.msra.mxu0 %v463
    %529 = vmatprep.subr.bf16.mxu0 %v466
    %530 = vmatpush1.bf16.msra.mxu0 %v465
    %531 = vmatprep.subr.bf16.mxu0 %v468
    %532 = vmatpush1.bf16.msra.mxu0 %v467
    %533 = vmatprep.subr.bf16.mxu0 %v470
    %534 = vmatpush1.bf16.msra.mxu0 %v469
    %535 = vmatprep.subr.bf16.mxu0 %v472
    %536 = vmatpush1.bf16.msra.mxu0 %v471
    %537 = vmatprep.subr.bf16.mxu0 %v474
    %538 = vmatpush1.bf16.msra.mxu0 %v473
    %539 = vmatprep.subr.bf16.mxu0 %v476
    %540 = vmatpush1.bf16.msra.mxu0 %v475
    %541 = vmatprep.subr.bf16.mxu0 %v478
    %542 = vmatpush1.bf16.msra.mxu0 %v477
    %543 = vmatprep.subr.bf16.mxu0 %v480
    %544 = vmatpush1.bf16.msra.mxu0 %v479
    %545 = vmatprep.subr.bf16.mxu0 %v482
    %546 = vmatpush1.bf16.msra.mxu0 %v481
    %547 = vmatprep.subr.bf16.mxu0 %v484
    %548 = vmatpush1.bf16.msra.mxu0 %v483
    %549 = vmatprep.mubr.bf16.mxu0 %v312
    %550 = vmatmul.mubr.bf16.gmra.mrb[0].mxu0 %v311
    %v551 = vpop.f32.mrb[0].mxu0
    %v552 = vadd.f32 %v350, %v551
    %v553 = vpop.f32.mrb[0].mxu0
    %v554 = vadd.f32 %v354, %v553
    %v555 = vpop.f32.mrb[0].mxu0
    %v556 = vadd.f32 %v350, %v555
    %v557 = vpop.f32.mrb[0].mxu0
    %v558 = vadd.f32 %v354, %v557
    %559 = vdwg.mxu0
    %560 = vst [vmem:[%s5] sm:$0xff] %v552
    %561 = vst [vmem:[%s5 + $0x8] sm:$0xff] %v554
    %562 = vst [vmem:[%s5 + $0x10] sm:$0xff] %v556
    %563 = vst [vmem:[%s5 + $0x18] sm:$0xff] %v558
    // Predicated region
    $region30: #{_ffn_call.1} parent=1 // pred_check
      _
    $region31: #{_ffn_call.1} parent=1 // pred_check_branch
      %565 = sbr.rel (0) target = $region33
    $region32: #{_ffn_call.1} parent=1 // pred_region
      _
    $region33: #{_ffn_call.1} parent=1 // pred_fallthru
      _
    // Predicated region
    $region34: #{_ffn_call.1} parent=1 // pred_check
      _
    $region35: #{_ffn_call.1} parent=1 // pred_check_branch
      %567 = sbr.rel (0) target = $region37
    $region36: #{_ffn_call.1} parent=1 // pred_region
      _
    $region37: #{_ffn_call.1} parent=1 // pred_fallthru
      _
    %568 = vsyncpa [#allocation3], 1
    %569 = vsyncpa [#allocation5], 1

</llo_original>
